<compile_context>
chip_gen: v6e
topology: v6e:2x2x1
jax: 0.10.0
libtpu: 0.0.40
codegen_flags: <defaults>
</compile_context>

<pallas_src>
import functools

import jax
import jax.numpy as jnp
from jax.experimental import pallas as pl
from jax.experimental.pallas import tpu as pltpu


_CHANNEL_GROUP = 64  # sublane strip-mine width for the in-vreg chunk fold


def _channel_attention_kernel(x_ref, w1_ref, w2_ref, o_ref, sum_acc, max_acc,
                              *, seq_len, tile_l, acc_w, needs_mask):
    # Grid = (N // NB, num_l). Blocks: x (NB, C, TL); w1 (H, C); w2 (C, H);
    # o (NB, 1, C). Scratch: running sum/max accumulators (NB, C, acc_w).
    l = pl.program_id(1)
    num_l = pl.num_programs(1)
    nb, n_ch, _ = x_ref.shape
    n_chunks = tile_l // acc_w

    @pl.when(l == 0)
    def _init():
        sum_acc[...] = jnp.zeros_like(sum_acc)
        max_acc[...] = jnp.full_like(max_acc, -jnp.inf)

    def _accumulate(masked):
        # Fold the TL/acc_w lane chunks of this tile into acc_w-wide running
        # sums/maxes held in vregs, then RMW the VMEM accumulators once per
        # tile. Strip-mined over channel groups so carried state stays small.
        for c0 in range(0, n_ch, _CHANNEL_GROUP):
            c1 = min(c0 + _CHANNEL_GROUP, n_ch)
            s = None
            m = None
            for k in range(n_chunks):
                c = x_ref[:, c0:c1, k * acc_w:(k + 1) * acc_w]
                if masked:
                    # Ragged last tile only: 0 for sum / -inf for max on lanes
                    # past the true sequence length.
                    lane = jax.lax.broadcasted_iota(jnp.int32, c.shape, 2)
                    valid = (l * tile_l + k * acc_w + lane) < seq_len
                    cs = jnp.where(valid, c, 0.0)
                    cm = jnp.where(valid, c, -jnp.inf)
                else:
                    cs, cm = c, c
                s = cs if s is None else s + cs
                m = cm if m is None else jnp.maximum(m, cm)
            sum_acc[:, c0:c1, :] = sum_acc[:, c0:c1, :] + s
            max_acc[:, c0:c1, :] = jnp.maximum(max_acc[:, c0:c1, :], m)

    if needs_mask:
        # Steady-state tiles take the unmasked fast path; only the last
        # (ragged) tile pays for the mask.
        @pl.when(l < num_l - 1)
        def _steady():
            _accumulate(masked=False)

        @pl.when(l == num_l - 1)
        def _ragged():
            _accumulate(masked=True)
    else:
        _accumulate(masked=False)

    @pl.when(l == num_l - 1)
    def _finalize():
        inv_l = jnp.float32(1.0 / seq_len)
        s = jnp.sum(sum_acc[...], axis=-1) * inv_l            # (NB, C) avg-pool
        m = jnp.max(max_acc[...], axis=-1)                    # (NB, C) max-pool
        p = jnp.concatenate([s, m], axis=0)                   # (2*NB, C) fused

        # fc1 -> relu -> fc2 for avg and max rows in one matmul pair. Tiny,
        # once per batch block, off the critical path (no extra layout work).
        dn = (((1,), (1,)), ((), ()))
        h = jax.lax.dot_general(p, w1_ref[...], dn,
                                preferred_element_type=jnp.float32)   # (2NB, H)
        h = jnp.maximum(h, 0.0)
        o2 = jax.lax.dot_general(h, w2_ref[...], dn,
                                 preferred_element_type=jnp.float32)  # (2NB, C)
        gate = jax.nn.sigmoid(o2[:nb] + o2[nb:]).astype(o_ref.dtype)  # (NB, C)
        for i in range(nb):
            o_ref[i] = gate[i:i + 1, :]                       # lane-dense store


def _tpu_vmem_capacity_bytes():
    try:
        return int(pltpu.get_tpu_info().vmem_capacity_bytes)
    except Exception:
        return 64 * 1024 * 1024  # conservative (v7x-sized) fallback


def _round_down_multiple(x, m):
    return (x // m) * m


def channel_attention(x, w1, w2, *, block_target_bytes=None):
    """x: (N, C, L) f32, w1: (C//16, C), w2: (C, C//16) -> (N, C, 1) f32."""
    N, C, L = x.shape
    H = w1.shape[0]
    assert w1.shape == (H, C) and w2.shape == (C, H)

    vmem_cap = _tpu_vmem_capacity_bytes()
    if block_target_bytes is None:
        # Per-generation x-block byte target: big enough to amortize the
        # ~0.35us/step grid overhead against HBM bandwidth. v7x (64 MiB VMEM,
        # ~3.2 TB/s HBM) wants larger blocks than v5e/v6e (128 MiB, <=1.4 TB/s).
        is_small_vmem_chip = vmem_cap <= 96 * 1024 * 1024
        block_target_bytes = (8 if is_small_vmem_chip else 4) * 1024 * 1024

    # --- L tiling -----------------------------------------------------------
    row_bytes = 4 * C * L
    if row_bytes <= block_target_bytes or L <= 128:
        tl = L                                   # whole row in a single tile
    else:
        tl = max(128, _round_down_multiple(block_target_bytes // (4 * C), 128))
        if tl >= L:
            tl = L
    num_l = pl.cdiv(L, tl)
    needs_mask = (L % tl) != 0
    acc_w = 128 if tl % 128 == 0 else tl         # running-accumulator lane width

    # --- batch blocking -------------------------------------------------------
    # For small rows pack several batch elements per grid step so DMAs stay in
    # the MiB range; keep >= 2 batch blocks when N >= 2 so the "parallel" axis
    # can feed both v7x TensorCores (harmless on single-TC v5e/v6e).
    nb = 1
    if tl == L:
        nb = max(1, min(N, block_target_bytes // max(1, row_bytes)))
        if N >= 2:
            nb = min(nb, N // 2)
        while N % nb != 0:
            nb -= 1
    # NOTE: when N == 1 the batch axis has a single block, so one v7x TC idles;
    # a two-way partial L reduction + external combine would fix that but is
    # not needed for correctness.

    kernel = functools.partial(
        _channel_attention_kernel,
        seq_len=L, tile_l=tl, acc_w=acc_w, needs_mask=needs_mask)

    # VMEM limit: chip capacity minus ~15% headroom (not a hard-coded 64 MiB).
    vmem_limit = max(int(vmem_cap * 0.85), 16 * 1024 * 1024)

    cost = pl.CostEstimate(
        flops=8 * N * C * H,                                   # 2 matmuls x 2 pooled rows
        transcendentals=N * C,                                 # sigmoid
        bytes_accessed=4 * N * C * L + 8 * C * H + 4 * N * C,  # dominated by the x read
    )

    def build(use_pipeline_mode):
        def spec(shape, index_map, buffers):
            if use_pipeline_mode and hasattr(pl, "Buffered"):
                return pl.BlockSpec(shape, index_map,
                                    pipeline_mode=pl.Buffered(buffers))
            return pl.BlockSpec(shape, index_map)

        grid_spec = pltpu.PrefetchScalarGridSpec(
            num_scalar_prefetch=0,
            grid=(N // nb, num_l),
            in_specs=[
                # Streaming activation tile: deeper buffering hides DMA issue
                # latency on what is otherwise a pure-DMA steady-state loop.
                spec((nb, C, tl), lambda b, l: (b, 0, l), 3),
                # Grid-invariant weights: one buffer is enough.
                spec((H, C), lambda b, l: (0, 0), 1),
                spec((C, H), lambda b, l: (0, 0), 1),
            ],
            out_specs=pl.BlockSpec((nb, 1, C), lambda b, l: (b, 0, 0)),
            scratch_shapes=[
                pltpu.VMEM((nb, C, acc_w), jnp.float32),   # running sum
                pltpu.VMEM((nb, C, acc_w), jnp.float32),   # running max
            ],
        )
        return pl.pallas_call(
            kernel,
            out_shape=jax.ShapeDtypeStruct((N, 1, C), x.dtype),
            grid_spec=grid_spec,
            compiler_params=pltpu.CompilerParams(
                dimension_semantics=("parallel", "arbitrary"),
                vmem_limit_bytes=vmem_limit,
            ),
            cost_estimate=cost,
        )

    try:
        out = build(use_pipeline_mode=True)(x, w1, w2)
    except Exception:
        # Fallback for JAX builds that reject BlockSpec(pipeline_mode=...).
        out = build(use_pipeline_mode=False)(x, w1, w2)

    return out.reshape(N, C, 1)


def channel_attention_ref(x, w1, w2):
    # Pure-JAX reference matching the PyTorch forward.
    avg = jnp.mean(x, axis=-1, keepdims=True)                 # (N, C, 1)
    mx = jnp.max(x, axis=-1, keepdims=True)                   # (N, C, 1)

    def mlp(p):
        h = jnp.einsum("hc,ncl->nhl", w1, p)
        h = jnp.maximum(h, 0.0)
        return jnp.einsum("ch,nhl->ncl", w2, h)

    return jax.nn.sigmoid(mlp(avg) + mlp(mx))


if __name__ == "__main__":
    key = jax.random.PRNGKey(0)
    kx, k1, k2, kx2, kx3 = jax.random.split(key, 5)

    # Small shapes consistent with the module (C >= 16 so C // 16 >= 1).
    N, C, L = 2, 64, 200
    H = C // 16

    x = jax.random.normal(kx, (N, C, L), dtype=jnp.float32)
    w1 = jax.random.normal(k1, (H, C), dtype=jnp.float32) * (1.0 / jnp.sqrt(C))
    w2 = jax.random.normal(k2, (C, H), dtype=jnp.float32) * (1.0 / jnp.sqrt(H))

    # Case 1: auto tiling -> single full-L tile per row (no masking).
    out1 = jax.block_until_ready(channel_attention(x, w1, w2))
    ref1 = channel_attention_ref(x, w1, w2)
    assert out1.shape == (N, C, 1)
    assert jnp.allclose(out1, ref1, atol=1e-5, rtol=1e-5), "mismatch (single tile)"

    # Case 2: force L tiling with a ragged, masked last tile (streaming path,
    # chunked (C,128) accumulators, masked epilogue).
    L2 = 600
    x2 = jax.random.normal(kx2, (N, C, L2), dtype=jnp.float32)
    out2 = jax.block_until_ready(
        channel_attention(x2, w1, w2, block_target_bytes=64 * 1024))
    ref2 = channel_attention_ref(x2, w1, w2)
    assert out2.shape == (N, C, 1)
    assert jnp.allclose(out2, ref2, atol=1e-5, rtol=1e-5), "mismatch (tiled+masked)"

    # Case 3: batch blocking (NB=2 rows per grid step, 2 parallel batch blocks).
    N3, L3 = 4, 256
    x3 = jax.random.normal(kx3, (N3, C, L3), dtype=jnp.float32)
    out3 = jax.block_until_ready(channel_attention(x3, w1, w2))
    ref3 = channel_attention_ref(x3, w1, w2)
    assert out3.shape == (N3, C, 1)
    assert jnp.allclose(out3, ref3, atol=1e-5, rtol=1e-5), "mismatch (batch blocked)"

    print("KERNEL_OK")
</pallas_src>

<mosaic_0001>
module attributes {stable_mosaic.version = 11 : i64} {
  func.func @_channel_attention_kernel(%arg0: i32, %arg1: i32, %arg2: memref<1x64x200xf32, #tpu.memory_space<vmem>>, %arg3: memref<4x64xf32, #tpu.memory_space<vmem>>, %arg4: memref<64x4xf32, #tpu.memory_space<vmem>>, %arg5: memref<1x1x64xf32, #tpu.memory_space<vmem>>, %arg6: memref<1x64x200xf32, #tpu.memory_space<vmem>>, %arg7: memref<1x64x200xf32, #tpu.memory_space<vmem>>) attributes {dimension_semantics = [#tpu.dimension_semantics<parallel>, #tpu.dimension_semantics<arbitrary>], iteration_bounds = array<i64: 2, 1>, scalar_prefetch = 0 : i64, scratch_operands = 2 : i64, tpu.core_type = #tpu.core_type<tc>, window_params = [{transform_indices = @transform_0, window_bounds = array<i64: 1, 64, 200>}, {pipeline_mode = #tpu.pipeline_mode<synchronous>, transform_indices = @transform_1, window_bounds = array<i64: 4, 64>}, {pipeline_mode = #tpu.pipeline_mode<synchronous>, transform_indices = @transform_2, window_bounds = array<i64: 64, 4>}, {transform_indices = @transform_3, window_bounds = array<i64: 1, 1, 64>}]} {
    %c0_i32 = arith.constant 0 : i32
    %0 = arith.cmpi eq, %arg1, %c0_i32 : i32
    %1 = arith.extui %0 : i1 to i32
    %c0_i32_0 = arith.constant 0 : i32
    %2 = arith.cmpi ne, %1, %c0_i32_0 : i32
    scf.if %2 {
      %cst = arith.constant 0.000000e+00 : f32
      %13 = vector.broadcast %cst : f32 to vector<1x64x200xf32>
      %c0_17 = arith.constant 0 : index
      %c0_18 = arith.constant 0 : index
      %c0_19 = arith.constant 0 : index
      %14 = vector.load %arg6[%c0_17, %c0_18, %c0_19] : memref<1x64x200xf32, #tpu.memory_space<vmem>>, vector<1x64x200xf32>
      tpu.vector_store %arg6[%c0_17, %c0_18, %c0_19], %13 {strides = array<i32>} : memref<1x64x200xf32, #tpu.memory_space<vmem>>, vector<1x64x200xf32>,
      %cst_20 = arith.constant 0xFF800000 : f32
      %15 = vector.broadcast %cst_20 : f32 to vector<1x64x200xf32>
      %c0_21 = arith.constant 0 : index
      %c0_22 = arith.constant 0 : index
      %c0_23 = arith.constant 0 : index
      %16 = vector.load %arg7[%c0_21, %c0_22, %c0_23] : memref<1x64x200xf32, #tpu.memory_space<vmem>>, vector<1x64x200xf32>
      tpu.vector_store %arg7[%c0_21, %c0_22, %c0_23], %15 {strides = array<i32>} : memref<1x64x200xf32, #tpu.memory_space<vmem>>, vector<1x64x200xf32>,
    } else {
    }
    %c0 = arith.constant 0 : index
    %c0_1 = arith.constant 0 : index
    %c0_2 = arith.constant 0 : index
    %3 = vector.load %arg2[%c0, %c0_1, %c0_2] : memref<1x64x200xf32, #tpu.memory_space<vmem>>, vector<1x64x200xf32>
    %c0_3 = arith.constant 0 : index
    %c0_4 = arith.constant 0 : index
    %c0_5 = arith.constant 0 : index
    %4 = vector.load %arg6[%c0_3, %c0_4, %c0_5] : memref<1x64x200xf32, #tpu.memory_space<vmem>>, vector<1x64x200xf32>
    %5 = arith.addf %4, %3 : vector<1x64x200xf32>
    %c0_6 = arith.constant 0 : index
    %c0_7 = arith.constant 0 : index
    %c0_8 = arith.constant 0 : index
    %6 = vector.load %arg6[%c0_6, %c0_7, %c0_8] : memref<1x64x200xf32, #tpu.memory_space<vmem>>, vector<1x64x200xf32>
    tpu.vector_store %arg6[%c0_6, %c0_7, %c0_8], %5 {strides = array<i32>} : memref<1x64x200xf32, #tpu.memory_space<vmem>>, vector<1x64x200xf32>,
    %c0_9 = arith.constant 0 : index
    %c0_10 = arith.constant 0 : index
    %c0_11 = arith.constant 0 : index
    %7 = vector.load %arg7[%c0_9, %c0_10, %c0_11] : memref<1x64x200xf32, #tpu.memory_space<vmem>>, vector<1x64x200xf32>
    %8 = arith.maximumf %7, %3 : vector<1x64x200xf32>
    %c0_12 = arith.constant 0 : index
    %c0_13 = arith.constant 0 : index
    %c0_14 = arith.constant 0 : index
    %9 = vector.load %arg7[%c0_12, %c0_13, %c0_14] : memref<1x64x200xf32, #tpu.memory_space<vmem>>, vector<1x64x200xf32>
    tpu.vector_store %arg7[%c0_12, %c0_13, %c0_14], %8 {strides = array<i32>} : memref<1x64x200xf32, #tpu.memory_space<vmem>>, vector<1x64x200xf32>,
    %c0_i32_15 = arith.constant 0 : i32
    %10 = arith.cmpi eq, %arg1, %c0_i32_15 : i32
    %11 = arith.extui %10 : i1 to i32
    %c0_i32_16 = arith.constant 0 : i32
    %12 = arith.cmpi ne, %11, %c0_i32_16 : i32
    scf.if %12 {
      %c0_17 = arith.constant 0 : index
      %c0_18 = arith.constant 0 : index
      %c0_19 = arith.constant 0 : index
      %13 = vector.load %arg6[%c0_17, %c0_18, %c0_19] : memref<1x64x200xf32, #tpu.memory_space<vmem>>, vector<1x64x200xf32>
      %cst = arith.constant dense<0.000000e+00> : vector<1x64xf32>
      %14 = vector.multi_reduction <add>, %13, %cst [2] : vector<1x64x200xf32> to vector<1x64xf32>
      %cst_20 = arith.constant 5.000000e-03 : f32
      %15 = vector.broadcast %cst_20 : f32 to vector<1x64xf32>
      %16 = arith.mulf %14, %15 : vector<1x64xf32>
      %c0_21 = arith.constant 0 : index
      %c0_22 = arith.constant 0 : index
      %c0_23 = arith.constant 0 : index
      %17 = vector.load %arg7[%c0_21, %c0_22, %c0_23] : memref<1x64x200xf32, #tpu.memory_space<vmem>>, vector<1x64x200xf32>
      %cst_24 = arith.constant dense<0xFF800000> : vector<1x64xf32>
      %18 = vector.multi_reduction <maximumf>, %17, %cst_24 [2] : vector<1x64x200xf32> to vector<1x64xf32>
      %19 = tpu.concatenate %16, %18 in 0 : vector<1x64xf32>, vector<1x64xf32> -> vector<2x64xf32>
      %c0_25 = arith.constant 0 : index
      %c0_26 = arith.constant 0 : index
      %20 = vector.load %arg3[%c0_25, %c0_26] : memref<4x64xf32, #tpu.memory_space<vmem>>, vector<4x64xf32>
      %cst_27 = arith.constant dense<0.000000e+00> : vector<2x4xf32>
      %21 = tpu.matmul %19, %20, %cst_27 {dimension_numbers = #tpu.dot_dimension_numbers<[1], [1], [0], [0], [0, 0, 1, 0], [], []>} : vector<2x64xf32>, vector<4x64xf32>, vector<2x4xf32> -> vector<2x4xf32>
      %cst_28 = arith.constant 0.000000e+00 : f32
      %22 = vector.broadcast %cst_28 : f32 to vector<2x4xf32>
      %23 = arith.maximumf %21, %22 : vector<2x4xf32>
      %c0_29 = arith.constant 0 : index
      %c0_30 = arith.constant 0 : index
      %24 = vector.load %arg4[%c0_29, %c0_30] : memref<64x4xf32, #tpu.memory_space<vmem>>, vector<64x4xf32>
      %cst_31 = arith.constant dense<0.000000e+00> : vector<2x64xf32>
      %25 = tpu.matmul %23, %24, %cst_31 {dimension_numbers = #tpu.dot_dimension_numbers<[1], [1], [0], [0], [0, 0, 1, 0], [], []>} : vector<2x4xf32>, vector<64x4xf32>, vector<2x64xf32> -> vector<2x64xf32>
      %26 = vector.extract_strided_slice %25 {offsets = [0, 0], sizes = [1, 64], strides = [1, 1]} : vector<2x64xf32> to vector<1x64xf32>
      %27 = vector.extract_strided_slice %25 {offsets = [1, 0], sizes = [1, 64], strides = [1, 1]} : vector<2x64xf32> to vector<1x64xf32>
      %28 = arith.addf %26, %27 : vector<1x64xf32>
      %29 = arith.negf %28 : vector<1x64xf32>
      %30 = math.exp %29 : vector<1x64xf32>
      %cst_32 = arith.constant 1.000000e+00 : f32
      %31 = vector.broadcast %cst_32 : f32 to vector<1x64xf32>
      %32 = arith.addf %31, %30 : vector<1x64xf32>
      %33 = arith.divf %31, %32 : vector<1x64xf32>
      %c0_33 = arith.constant 0 : index
      %c0_34 = arith.constant 0 : index
      %c0_35 = arith.constant 0 : index
      %34 = vector.load %arg5[%c0_33, %c0_34, %c0_35] : memref<1x1x64xf32, #tpu.memory_space<vmem>>, vector<1x1x64xf32>
      %35 = vector.shape_cast %34 : vector<1x1x64xf32> to vector<1x64xf32>
      %36 = vector.shape_cast %33 : vector<1x64xf32> to vector<1x1x64xf32>
      tpu.vector_store %arg5[%c0_33, %c0_34, %c0_35], %36 {strides = array<i32>} : memref<1x1x64xf32, #tpu.memory_space<vmem>>, vector<1x1x64xf32>,
    } else {
    }
    return
  }
  func.func @transform_0(%arg0: i32, %arg1: i32) -> (i32, i32, i32) {
    %c0_i32 = arith.constant 0 : i32
    %c0_i32_0 = arith.constant 0 : i32
    return %arg0, %c0_i32, %arg1 : i32, i32, i32
  }
  func.func @transform_1(%arg0: i32, %arg1: i32) -> (i32, i32) {
    %c0_i32 = arith.constant 0 : i32
    %c0_i32_0 = arith.constant 0 : i32
    %c0_i32_1 = arith.constant 0 : i32
    return %c0_i32, %c0_i32_0 : i32, i32
  }
  func.func @transform_2(%arg0: i32, %arg1: i32) -> (i32, i32) {
    %c0_i32 = arith.constant 0 : i32
    %c0_i32_0 = arith.constant 0 : i32
    %c0_i32_1 = arith.constant 0 : i32
    return %c0_i32, %c0_i32_0 : i32, i32
  }
  func.func @transform_3(%arg0: i32, %arg1: i32) -> (i32, i32, i32) {
    %c0_i32 = arith.constant 0 : i32
    %c0_i32_0 = arith.constant 0 : i32
    %c0_i32_1 = arith.constant 0 : i32
    return %arg0, %c0_i32, %c0_i32_0 : i32, i32, i32
  }
}

</mosaic_0001>

<llo_original>
// kernel: tpu_custom_call.1
$region0: #{tpu_custom_call.1}
  #allocation0 [shape = 'u32[]', space=smem, size = 0x4, offset = 0x4, fixed_abs, tag = 'smem constant byte address 0x4 - core index']
  #allocation1 [shape = 'u32[144,128]{1,0:T(1,128)}', space=vmem, size = 0x12000, scoped, tag = 'internal scratch']
  #allocation2 [shape = 'f32[1,64,200]{2,1,0:T(8,128)}', space=vmem, size = 0x10000, scoped, tag = 'scratch operand']
  #allocation3 [shape = 'f32[1,64,200]{2,1,0:T(8,128)}', space=vmem, size = 0x10000, scoped, tag = 'scratch operand']
  %s0 = inlined_call_operand.hbm [shape: f32[2,64,200], index: 0, kind: input, shape index: {}]
  %s1 = inlined_call_operand.vmem [shape: f32[4,64], index: 1, kind: input, shape index: {}]
  %s2 = inlined_call_operand.vmem [shape: f32[64,4], index: 2, kind: input, shape index: {}]
  %s3 = inlined_call_operand.hbm [shape: f32[2,1,64], index: 3, kind: output, shape index: {}]
  %s4 = sld [smem:[#allocation0]]
  $region57: #{tpu_custom_call.1} parent=0
    _
  %s6 = ssub.s32 1, %s4
  %s7 = scalar_select 0, %s6, %s4
  $region1: #{tpu_custom_call.1} parent=0
    #allocation4 [shape = 'u8[131072]{0}', space=vmem, size = 0x20000, scoped, tag = 'input window, operand 0']
    #allocation5 [shape = 's32[2]{0}', space=sflag, size = 0x8, scoped, tag = 'scoped memory for tpu_custom_call.1']
    #allocation6 [shape = 's32[2]{0}', space=sflag, size = 0x8, scoped, tag = 'scoped memory for tpu_custom_call.1']
    #allocation7 [shape = 'u8[1024]{0}', space=vmem, size = 0x400, scoped, tag = 'output window, operand 0']
    %8 = vsyncpa [#allocation5], 0
    %s9 = scalar_lea.sflag [#allocation5], 1
    %10 = vsyncpa %s9, 0
    %11 = vsyncpa [#allocation6], 0
    %s12 = scalar_lea.sflag [#allocation6], 1
    %13 = vsyncpa %s12, 0
    loop: start=0, step=1, limit=4
    $region2: #{tpu_custom_call.1} parent=1 // loop_pre_header
      _
    $region3: #{tpu_custom_call.1} parent=1 // loop_header
      %s15 = sphi 0, %s19
      %p16 = scmp.ge.s32.totalorder %s15, 4
      %s22 = sphi 0, %s34
      %s23 = sphi 0, %s30
      %s24 = sphi 0, %s22
      %s25 = sphi 0, %s23
      %s26 = sphi 0, %s24
      %s27 = sphi 0, %s25
      %s39 = sphi 0, %s41
      %s42 = sphi 0, %s39
      %s43 = sphi 0, %s42
      %s59 = sphi 0, %s43
      %s63 = sphi 0, %s63
      %s65 = sphi 0, %s63
      %s66 = sphi 0, %s65
      %s80 = sphi 0, %s66
      %s84 = sphi 0, %s84
      %s86 = sphi 0, %s84
      %s87 = sphi 0, %s86
      %s101 = sphi 0, %s87
      %s107 = sphi 0, %s109
      %s110 = sphi 0, %s107
      %s111 = sphi 0, %s110
      %s127 = sphi 0, %s111
    $region4: #{tpu_custom_call.1} parent=1 // loop_header_branch
      %18 = sbr.rel (%p16) target = $region8
    $region5: #{tpu_custom_call.1} parent=1 // loop_body
      %s20 = ssub.s32 %s15, 1
      %s21 = ssub.s32 %s15, 2
      %s28 = sadd.s32 1, %s23
      %p29 = scmp.ge.s32.totalorder %s28, 1
      %s30 = scalar_select %p29, 0, %s28
      %s31 = sadd.s32 1, %s22
      %s32 = scalar_select %p29, %s31, %s22
      %p33 = scmp.ge.s32.totalorder %s32, 2
      %s34 = scalar_select %p33, 0, %s32
      %s35 = ssub.s32 %s22, %s34
      %s36 = ssub.s32 %s23, %s30
      %s37 = sor.u32 %s35, %s36
      %p38 = scmp.eq.s32.totalorder %s37, 0
      %s40 = sadd.s32 %s39, 1
      %s41 = scalar_select %p38, %s39, %s40
      %p44 = pneg %p38
      %p45 = scmp.eq.s32.totalorder %s15, 1
      %p46 = por %p44, %p45
      %p47 = scmp.ne.s32.totalorder %s39, %s42
      %p48 = scmp.eq.s32.totalorder %s15, 0
      %p49 = por %p47, %p48
      %p50 = scmp.ne.s32.totalorder %s39, %s42
      %p51 = scmp.eq.s32.totalorder %s20, 1
      %p52 = por %p50, %p51
      %p53 = scmp.ne.s32.totalorder %s42, %s43
      %p54 = scmp.eq.s32.totalorder %s20, 0
      %p55 = por %p53, %p54
      %p56 = scmp.ne.s32.totalorder %s42, %s43
      %p57 = scmp.eq.s32.totalorder %s21, 1
      %p58 = por %p56, %p57
      %p60 = scmp.ne.s32.totalorder %s43, %s59
      %p61 = scmp.eq.s32.totalorder %s21, 0
      %p62 = por %p60, %p61
      %s64 = sadd.s32 %s63, 1
      %p67 = scmp.eq.s32.totalorder %s15, 1
      %p68 = scmp.ne.s32.totalorder %s63, %s65
      %p69 = scmp.eq.s32.totalorder %s15, 0
      %p70 = por %p68, %p69
      %p71 = scmp.ne.s32.totalorder %s63, %s65
      %p72 = scmp.eq.s32.totalorder %s20, 1
      %p73 = por %p71, %p72
      %p74 = scmp.ne.s32.totalorder %s65, %s66
      %p75 = scmp.eq.s32.totalorder %s20, 0
      %p76 = por %p74, %p75
      %p77 = scmp.ne.s32.totalorder %s65, %s66
      %p78 = scmp.eq.s32.totalorder %s21, 1
      %p79 = por %p77, %p78
      %p81 = scmp.ne.s32.totalorder %s66, %s80
      %p82 = scmp.eq.s32.totalorder %s21, 0
      %p83 = por %p81, %p82
      %s85 = sadd.s32 %s84, 1
      %p88 = scmp.eq.s32.totalorder %s15, 1
      %p89 = scmp.ne.s32.totalorder %s84, %s86
      %p90 = scmp.eq.s32.totalorder %s15, 0
      %p91 = por %p89, %p90
      %p92 = scmp.ne.s32.totalorder %s84, %s86
      %p93 = scmp.eq.s32.totalorder %s20, 1
      %p94 = por %p92, %p93
      %p95 = scmp.ne.s32.totalorder %s86, %s87
      %p96 = scmp.eq.s32.totalorder %s20, 0
      %p97 = por %p95, %p96
      %p98 = scmp.ne.s32.totalorder %s86, %s87
      %p99 = scmp.eq.s32.totalorder %s21, 1
      %p100 = por %p98, %p99
      %p102 = scmp.ne.s32.totalorder %s87, %s101
      %p103 = scmp.eq.s32.totalorder %s21, 0
      %p104 = por %p102, %p103
      %s105 = ssub.s32 %s22, %s34
      %p106 = scmp.eq.s32.totalorder %s105, 0
      %s108 = sadd.s32 %s107, 1
      %s109 = scalar_select %p106, %s107, %s108
      %p112 = pneg %p106
      %p113 = scmp.eq.s32.totalorder %s15, 1
      %p114 = por %p112, %p113
      %p115 = scmp.ne.s32.totalorder %s107, %s110
      %p116 = scmp.eq.s32.totalorder %s15, 0
      %p117 = por %p115, %p116
      %p118 = scmp.ne.s32.totalorder %s107, %s110
      %p119 = scmp.eq.s32.totalorder %s20, 1
      %p120 = por %p118, %p119
      %p121 = scmp.ne.s32.totalorder %s110, %s111
      %p122 = scmp.eq.s32.totalorder %s20, 0
      %p123 = por %p121, %p122
      %p124 = scmp.ne.s32.totalorder %s110, %s111
      %p125 = scmp.eq.s32.totalorder %s21, 1
      %p126 = por %p124, %p125
      %p128 = scmp.ne.s32.totalorder %s111, %s127
      %p129 = scmp.eq.s32.totalorder %s21, 0
      %p130 = por %p128, %p129
      %p131 = scmp.le.s32.totalorder 1, %s15
      %p132 = scmp.lt.s32.totalorder %s15, 3
      %p133 = pnand %p131, %p132
      %p134 = pneg %p133
      // Predicated region
      $region9: #{tpu_custom_call.1} parent=5 // pred_check
        _
      $region10: #{tpu_custom_call.1} parent=5 // pred_check_branch
        %136 = sbr.rel (%p133) target = $region12
      $region11: #{tpu_custom_call.1} parent=5 // pred_region
        %s137 = ssub.s32 %s15, 1
        // Predicated region
        $region13: #{tpu_custom_call.1} parent=11 // pred_check
          %p138 = pneg %p76
        $region14: #{tpu_custom_call.1} parent=11 // pred_check_branch
          %140 = sbr.rel (%p138) target = $region16
        $region15: #{tpu_custom_call.1} parent=11 // pred_region
          _
        $region16: #{tpu_custom_call.1} parent=11 // pred_fallthru
          _
        // Predicated region
        $region17: #{tpu_custom_call.1} parent=11 // pred_check
          %p141 = pneg %p97
        $region18: #{tpu_custom_call.1} parent=11 // pred_check_branch
          %143 = sbr.rel (%p141) target = $region20
        $region19: #{tpu_custom_call.1} parent=11 // pred_region
          _
        $region20: #{tpu_custom_call.1} parent=11 // pred_fallthru
          _
      $region12: #{tpu_custom_call.1} parent=5 // pred_fallthru
        _
      %p144 = scmp.lt.s32.totalorder %s15, 2
      // Predicated region
      $region21: #{tpu_custom_call.1} parent=5 // pred_check
        %p145 = pneg %p144
      $region22: #{tpu_custom_call.1} parent=5 // pred_check_branch
        %147 = sbr.rel (%p145) target = $region24
      $region23: #{tpu_custom_call.1} parent=5 // pred_region
        // Predicated region
        $region25: #{tpu_custom_call.1} parent=23 // pred_check
          %p148 = pneg %p49
        $region26: #{tpu_custom_call.1} parent=23 // pred_check_branch
          %150 = sbr.rel (%p148) target = $region28
        $region27: #{tpu_custom_call.1} parent=23 // pred_region
          %s151 = sand.u32 %s39, 1
          %s152 = scalar_lea.sflag [#allocation5], %s151
          %s153 = sand.u32 %s39, 1
          %s154 = smul.addr %s153, 128
          %s155 = scalar_lea.vmem [#allocation4], %s154
          %s156 = smul.u32 2, %s23
          %s158 = ssub.s32 2048, 2048
          %159 = vsyncadd %s152, %s158
          %s160 = smul.addr %s22, 16
          %s161 = sadd.s32 %s156, %s160
          %s162 = smul.addr %s161, 128
          %s163 = scalar_lea.hbm %s0, %s162
          %s164 = sshll.u32 %s155, 4
          %s165 = int_to_ptr.vmem [resolvable:$true] %s164
          %170 = dma.hbm_to_vmem [thread:$0]  %s163, 2048, %s165, %s152, 256, 256, 16
        $region28: #{tpu_custom_call.1} parent=23 // pred_fallthru
          _
      $region24: #{tpu_custom_call.1} parent=5 // pred_fallthru
        _
      %p171 = scmp.le.s32.totalorder 1, %s15
      %p172 = scmp.lt.s32.totalorder %s15, 3
      %p173 = pnand %p171, %p172
      %p174 = pneg %p173
      // Predicated region
      $region29: #{tpu_custom_call.1} parent=5 // pred_check
        _
      $region30: #{tpu_custom_call.1} parent=5 // pred_check_branch
        %176 = sbr.rel (%p173) target = $region32
      $region31: #{tpu_custom_call.1} parent=5 // pred_region
        %s177 = ssub.s32 %s15, 1
        %s178 = sand.u32 %s42, 1
        %s179 = scalar_lea.sflag [#allocation5], %s178
        %s180 = sand.u32 %s42, 1
        %s181 = smul.addr %s180, 128
        %s182 = scalar_lea.vmem [#allocation4], %s181
        // Predicated region
        $region33: #{tpu_custom_call.1} parent=31 // pred_check
          %p183 = pneg %p55
        $region34: #{tpu_custom_call.1} parent=31 // pred_check_branch
          %185 = sbr.rel (%p183) target = $region36
        $region35: #{tpu_custom_call.1} parent=31 // pred_region
          %186 = dma.done %s179, 2048
        $region36: #{tpu_custom_call.1} parent=31 // pred_fallthru
          _
        %s187 = sand.u32 %s42, 1
        %s188 = scalar_lea.sflag [#allocation5], %s187
        %s189 = sand.u32 %s42, 1
        %s190 = smul.addr %s189, 128
        %s191 = scalar_lea.vmem [#allocation4], %s190
        %p192 = pneg %p55
        %p193 = pneg %p52
        %p194 = pneg %p76
        %p195 = pneg %p73
        %p196 = pneg %p97
        %p197 = pneg %p94
        %p198 = pneg %p123
        %p199 = pneg %p120
        %s200 = sand.u32 %s110, 1
        %s201 = scalar_lea.sflag [#allocation6], %s200
        %s202 = sand.u32 %s110, 1
        %s203 = scalar_lea.vmem [#allocation7], %s202
        %s204 = smul.u32 2, %s25
        %p205 = scmp.eq.s32.totalorder %s25, 0
        // Predicated region
        $region37: #{tpu_custom_call.1} parent=31 // pred_check
          %p206 = pneg %p205
        $region38: #{tpu_custom_call.1} parent=31 // pred_check_branch
          %208 = sbr.rel (%p206) target = $region40
        $region39: #{tpu_custom_call.1} parent=31 // pred_region
          %209 = vst [vmem:[#allocation2] sm:$0xff] 0.0
          %vm210 = vcmask 588800
          %211 = vst.msk [vmem:[#allocation2 + $0x8] sm:$0xff] %vm210, 0.0
          %212 = vst [vmem:[#allocation2 + $0x10] sm:$0xff] 0.0
          %213 = vst.msk [vmem:[#allocation2 + $0x18] sm:$0xff] %vm210, 0.0
          %214 = vst [vmem:[#allocation2 + $0x20] sm:$0xff] 0.0
          %215 = vst.msk [vmem:[#allocation2 + $0x28] sm:$0xff] %vm210, 0.0
          %216 = vst [vmem:[#allocation2 + $0x30] sm:$0xff] 0.0
          %217 = vst.msk [vmem:[#allocation2 + $0x38] sm:$0xff] %vm210, 0.0
          %218 = vst [vmem:[#allocation2 + $0x40] sm:$0xff] 0.0
          %219 = vst.msk [vmem:[#allocation2 + $0x48] sm:$0xff] %vm210, 0.0
          %220 = vst [vmem:[#allocation2 + $0x50] sm:$0xff] 0.0
          %221 = vst.msk [vmem:[#allocation2 + $0x58] sm:$0xff] %vm210, 0.0
          %222 = vst [vmem:[#allocation2 + $0x60] sm:$0xff] 0.0
          %223 = vst.msk [vmem:[#allocation2 + $0x68] sm:$0xff] %vm210, 0.0
          %224 = vst [vmem:[#allocation2 + $0x70] sm:$0xff] 0.0
          %225 = vst.msk [vmem:[#allocation2 + $0x78] sm:$0xff] %vm210, 0.0
          %226 = vst [vmem:[#allocation3] sm:$0xff] -inf
          %227 = vst.msk [vmem:[#allocation3 + $0x8] sm:$0xff] %vm210, -inf
          %228 = vst [vmem:[#allocation3 + $0x10] sm:$0xff] -inf
          %229 = vst.msk [vmem:[#allocation3 + $0x18] sm:$0xff] %vm210, -inf
          %230 = vst [vmem:[#allocation3 + $0x20] sm:$0xff] -inf
          %231 = vst.msk [vmem:[#allocation3 + $0x28] sm:$0xff] %vm210, -inf
          %232 = vst [vmem:[#allocation3 + $0x30] sm:$0xff] -inf
          %233 = vst.msk [vmem:[#allocation3 + $0x38] sm:$0xff] %vm210, -inf
          %234 = vst [vmem:[#allocation3 + $0x40] sm:$0xff] -inf
          %235 = vst.msk [vmem:[#allocation3 + $0x48] sm:$0xff] %vm210, -inf
          %236 = vst [vmem:[#allocation3 + $0x50] sm:$0xff] -inf
          %237 = vst.msk [vmem:[#allocation3 + $0x58] sm:$0xff] %vm210, -inf
          %238 = vst [vmem:[#allocation3 + $0x60] sm:$0xff] -inf
          %239 = vst.msk [vmem:[#allocation3 + $0x68] sm:$0xff] %vm210, -inf
          %240 = vst [vmem:[#allocation3 + $0x70] sm:$0xff] -inf
          %241 = vst.msk [vmem:[#allocation3 + $0x78] sm:$0xff] %vm210, -inf
        $region40: #{tpu_custom_call.1} parent=31 // pred_fallthru
          _
        %v242 = vld [vmem:[%s182] sm:$0xff]
        %v243 = vld [vmem:[%s182 + $0x8] sm:$0xff]
        %v244 = vld [vmem:[%s182 + $0x10] sm:$0xff]
        %v245 = vld [vmem:[%s182 + $0x18] sm:$0xff]
        %v246 = vld [vmem:[%s182 + $0x20] sm:$0xff]
        %v247 = vld [vmem:[%s182 + $0x28] sm:$0xff]
        %v248 = vld [vmem:[%s182 + $0x30] sm:$0xff]
        %v249 = vld [vmem:[%s182 + $0x38] sm:$0xff]
        %v250 = vld [vmem:[%s182 + $0x40] sm:$0xff]
        %v251 = vld [vmem:[%s182 + $0x48] sm:$0xff]
        %v252 = vld [vmem:[%s182 + $0x50] sm:$0xff]
        %v253 = vld [vmem:[%s182 + $0x58] sm:$0xff]
        %v254 = vld [vmem:[%s182 + $0x60] sm:$0xff]
        %v255 = vld [vmem:[%s182 + $0x68] sm:$0xff]
        %v256 = vld [vmem:[%s182 + $0x70] sm:$0xff]
        %v257 = vld [vmem:[%s182 + $0x78] sm:$0xff]
        %v258 = vld [vmem:[#allocation2] sm:$0xff]
        %v259 = vld [vmem:[#allocation2 + $0x8] sm:$0xff]
        %v260 = vld [vmem:[#allocation2 + $0x10] sm:$0xff]
        %v261 = vld [vmem:[#allocation2 + $0x18] sm:$0xff]
        %v262 = vld [vmem:[#allocation2 + $0x20] sm:$0xff]
        %v263 = vld [vmem:[#allocation2 + $0x28] sm:$0xff]
        %v264 = vld [vmem:[#allocation2 + $0x30] sm:$0xff]
        %v265 = vld [vmem:[#allocation2 + $0x38] sm:$0xff]
        %v266 = vld [vmem:[#allocation2 + $0x40] sm:$0xff]
        %v267 = vld [vmem:[#allocation2 + $0x48] sm:$0xff]
        %v268 = vld [vmem:[#allocation2 + $0x50] sm:$0xff]
        %v269 = vld [vmem:[#allocation2 + $0x58] sm:$0xff]
        %v270 = vld [vmem:[#allocation2 + $0x60] sm:$0xff]
        %v271 = vld [vmem:[#allocation2 + $0x68] sm:$0xff]
        %v272 = vld [vmem:[#allocation2 + $0x70] sm:$0xff]
        %v273 = vld [vmem:[#allocation2 + $0x78] sm:$0xff]
        %v274 = vadd.f32 %v258, %v242
        %v275 = vadd.f32 %v259, %v243
        %v276 = vadd.f32 %v260, %v244
        %v277 = vadd.f32 %v261, %v245
        %v278 = vadd.f32 %v262, %v246
        %v279 = vadd.f32 %v263, %v247
        %v280 = vadd.f32 %v264, %v248
        %v281 = vadd.f32 %v265, %v249
        %v282 = vadd.f32 %v266, %v250
        %v283 = vadd.f32 %v267, %v251
        %v284 = vadd.f32 %v268, %v252
        %v285 = vadd.f32 %v269, %v253
        %v286 = vadd.f32 %v270, %v254
        %v287 = vadd.f32 %v271, %v255
        %v288 = vadd.f32 %v272, %v256
        %v289 = vadd.f32 %v273, %v257
        %290 = vst [vmem:[#allocation2] sm:$0xff] %v274
        %vm291 = vcmask 588800
        %292 = vst.msk [vmem:[#allocation2 + $0x8] sm:$0xff] %vm291, %v275
        %293 = vst [vmem:[#allocation2 + $0x10] sm:$0xff] %v276
        %294 = vst.msk [vmem:[#allocation2 + $0x18] sm:$0xff] %vm291, %v277
        %295 = vst [vmem:[#allocation2 + $0x20] sm:$0xff] %v278
        %296 = vst.msk [vmem:[#allocation2 + $0x28] sm:$0xff] %vm291, %v279
        %297 = vst [vmem:[#allocation2 + $0x30] sm:$0xff] %v280
        %298 = vst.msk [vmem:[#allocation2 + $0x38] sm:$0xff] %vm291, %v281
        %299 = vst [vmem:[#allocation2 + $0x40] sm:$0xff] %v282
        %300 = vst.msk [vmem:[#allocation2 + $0x48] sm:$0xff] %vm291, %v283
        %301 = vst [vmem:[#allocation2 + $0x50] sm:$0xff] %v284
        %302 = vst.msk [vmem:[#allocation2 + $0x58] sm:$0xff] %vm291, %v285
        %303 = vst [vmem:[#allocation2 + $0x60] sm:$0xff] %v286
        %304 = vst.msk [vmem:[#allocation2 + $0x68] sm:$0xff] %vm291, %v287
        %305 = vst [vmem:[#allocation2 + $0x70] sm:$0xff] %v288
        %306 = vst.msk [vmem:[#allocation2 + $0x78] sm:$0xff] %vm291, %v289
        %v307 = vld [vmem:[#allocation3] sm:$0xff]
        %v308 = vld [vmem:[#allocation3 + $0x8] sm:$0xff]
        %v309 = vld [vmem:[#allocation3 + $0x10] sm:$0xff]
        %v310 = vld [vmem:[#allocation3 + $0x18] sm:$0xff]
        %v311 = vld [vmem:[#allocation3 + $0x20] sm:$0xff]
        %v312 = vld [vmem:[#allocation3 + $0x28] sm:$0xff]
        %v313 = vld [vmem:[#allocation3 + $0x30] sm:$0xff]
        %v314 = vld [vmem:[#allocation3 + $0x38] sm:$0xff]
        %v315 = vld [vmem:[#allocation3 + $0x40] sm:$0xff]
        %v316 = vld [vmem:[#allocation3 + $0x48] sm:$0xff]
        %v317 = vld [vmem:[#allocation3 + $0x50] sm:$0xff]
        %v318 = vld [vmem:[#allocation3 + $0x58] sm:$0xff]
        %v319 = vld [vmem:[#allocation3 + $0x60] sm:$0xff]
        %v320 = vld [vmem:[#allocation3 + $0x68] sm:$0xff]
        %v321 = vld [vmem:[#allocation3 + $0x70] sm:$0xff]
        %v322 = vld [vmem:[#allocation3 + $0x78] sm:$0xff]
        %v323 = vmax.f32 %v307, %v242
        %v324 = vmax.f32 %v308, %v243
        %v325 = vmax.f32 %v309, %v244
        %v326 = vmax.f32 %v310, %v245
        %v327 = vmax.f32 %v311, %v246
        %v328 = vmax.f32 %v312, %v247
        %v329 = vmax.f32 %v313, %v248
        %v330 = vmax.f32 %v314, %v249
        %v331 = vmax.f32 %v315, %v250
        %v332 = vmax.f32 %v316, %v251
        %v333 = vmax.f32 %v317, %v252
        %v334 = vmax.f32 %v318, %v253
        %v335 = vmax.f32 %v319, %v254
        %v336 = vmax.f32 %v320, %v255
        %v337 = vmax.f32 %v321, %v256
        %v338 = vmax.f32 %v322, %v257
        %339 = vst [vmem:[#allocation3] sm:$0xff] %v323
        %340 = vst.msk [vmem:[#allocation3 + $0x8] sm:$0xff] %vm291, %v324
        %341 = vst [vmem:[#allocation3 + $0x10] sm:$0xff] %v325
        %342 = vst.msk [vmem:[#allocation3 + $0x18] sm:$0xff] %vm291, %v326
        %343 = vst [vmem:[#allocation3 + $0x20] sm:$0xff] %v327
        %344 = vst.msk [vmem:[#allocation3 + $0x28] sm:$0xff] %vm291, %v328
        %345 = vst [vmem:[#allocation3 + $0x30] sm:$0xff] %v329
        %346 = vst.msk [vmem:[#allocation3 + $0x38] sm:$0xff] %vm291, %v330
        %347 = vst [vmem:[#allocation3 + $0x40] sm:$0xff] %v331
        %348 = vst.msk [vmem:[#allocation3 + $0x48] sm:$0xff] %vm291, %v332
        %349 = vst [vmem:[#allocation3 + $0x50] sm:$0xff] %v333
        %350 = vst.msk [vmem:[#allocation3 + $0x58] sm:$0xff] %vm291, %v334
        %351 = vst [vmem:[#allocation3 + $0x60] sm:$0xff] %v335
        %352 = vst.msk [vmem:[#allocation3 + $0x68] sm:$0xff] %vm291, %v336
        %353 = vst [vmem:[#allocation3 + $0x70] sm:$0xff] %v337
        %354 = vst.msk [vmem:[#allocation3 + $0x78] sm:$0xff] %vm291, %v338
        // Predicated region
        $region41: #{tpu_custom_call.1} parent=31 // pred_check
          %p355 = pneg %p205
        $region42: #{tpu_custom_call.1} parent=31 // pred_check_branch
          %357 = sbr.rel (%p355) target = $region44
        $region43: #{tpu_custom_call.1} parent=31 // pred_region
          %v358 = vld [vmem:[#allocation2] sm:$0xff]
          %v359 = vld [vmem:[#allocation2 + $0x8] sm:$0xff]
          %v360 = vld [vmem:[#allocation2 + $0x10] sm:$0xff]
          %v361 = vld [vmem:[#allocation2 + $0x18] sm:$0xff]
          %v362 = vld [vmem:[#allocation2 + $0x20] sm:$0xff]
          %v363 = vld [vmem:[#allocation2 + $0x28] sm:$0xff]
          %v364 = vld [vmem:[#allocation2 + $0x30] sm:$0xff]
          %v365 = vld [vmem:[#allocation2 + $0x38] sm:$0xff]
          %v366 = vld [vmem:[#allocation2 + $0x40] sm:$0xff]
          %v367 = vld [vmem:[#allocation2 + $0x48] sm:$0xff]
          %v368 = vld [vmem:[#allocation2 + $0x50] sm:$0xff]
          %v369 = vld [vmem:[#allocation2 + $0x58] sm:$0xff]
          %v370 = vld [vmem:[#allocation2 + $0x60] sm:$0xff]
          %v371 = vld [vmem:[#allocation2 + $0x68] sm:$0xff]
          %v372 = vld [vmem:[#allocation2 + $0x70] sm:$0xff]
          %v373 = vld [vmem:[#allocation2 + $0x78] sm:$0xff]
          %v374 = vsel %vm291, %v359, 0.0
          %v375 = vadd.f32 %v358, %v374
          %376 = vadd.xlane.f32.xlu0 %v375
          %v377 = vpop.xlane.xlu0 %376
          %v378 = vsel %vm291, %v361, 0.0
          %v379 = vadd.f32 %v360, %v378
          %380 = vadd.xlane.f32.xlu0 %v379
          %v381 = vpop.xlane.xlu0 %380
          %v382 = vsel %vm291, %v363, 0.0
          %v383 = vadd.f32 %v362, %v382
          %384 = vadd.xlane.f32.xlu0 %v383
          %v385 = vpop.xlane.xlu0 %384
          %v386 = vsel %vm291, %v365, 0.0
          %v387 = vadd.f32 %v364, %v386
          %388 = vadd.xlane.f32.xlu0 %v387
          %v389 = vpop.xlane.xlu0 %388
          %v390 = vsel %vm291, %v367, 0.0
          %v391 = vadd.f32 %v366, %v390
          %392 = vadd.xlane.f32.xlu0 %v391
          %v393 = vpop.xlane.xlu0 %392
          %v394 = vsel %vm291, %v369, 0.0
          %v395 = vadd.f32 %v368, %v394
          %396 = vadd.xlane.f32.xlu0 %v395
          %v397 = vpop.xlane.xlu0 %396
          %v398 = vsel %vm291, %v371, 0.0
          %v399 = vadd.f32 %v370, %v398
          %400 = vadd.xlane.f32.xlu0 %v399
          %v401 = vpop.xlane.xlu0 %400
          %v402 = vsel %vm291, %v373, 0.0
          %v403 = vadd.f32 %v372, %v402
          %404 = vadd.xlane.f32.xlu0 %v403
          %v405 = vpop.xlane.xlu0 %404
          %v406 = vmul.f32 %v377, 0.005
          %v407 = vmul.f32 %v381, 0.005
          %v408 = vmul.f32 %v385, 0.005
          %v409 = vmul.f32 %v389, 0.005
          %v410 = vmul.f32 %v393, 0.005
          %v411 = vmul.f32 %v397, 0.005
          %v412 = vmul.f32 %v401, 0.005
          %v413 = vmul.f32 %v405, 0.005
          %v414 = vld [vmem:[#allocation3] sm:$0xff]
          %v415 = vld [vmem:[#allocation3 + $0x8] sm:$0xff]
          %v416 = vld [vmem:[#allocation3 + $0x10] sm:$0xff]
          %v417 = vld [vmem:[#allocation3 + $0x18] sm:$0xff]
          %v418 = vld [vmem:[#allocation3 + $0x20] sm:$0xff]
          %v419 = vld [vmem:[#allocation3 + $0x28] sm:$0xff]
          %v420 = vld [vmem:[#allocation3 + $0x30] sm:$0xff]
          %v421 = vld [vmem:[#allocation3 + $0x38] sm:$0xff]
          %v422 = vld [vmem:[#allocation3 + $0x40] sm:$0xff]
          %v423 = vld [vmem:[#allocation3 + $0x48] sm:$0xff]
          %v424 = vld [vmem:[#allocation3 + $0x50] sm:$0xff]
          %v425 = vld [vmem:[#allocation3 + $0x58] sm:$0xff]
          %v426 = vld [vmem:[#allocation3 + $0x60] sm:$0xff]
          %v427 = vld [vmem:[#allocation3 + $0x68] sm:$0xff]
          %v428 = vld [vmem:[#allocation3 + $0x70] sm:$0xff]
          %v429 = vld [vmem:[#allocation3 + $0x78] sm:$0xff]
          %v430 = vsel %vm291, %v415, -inf
          %v431 = vmax.f32 %v414, %v430
          %432 = vmax.xlane.f32.xlu0 %v431
          %v433 = vpop.xlane.xlu0 %432
          %v434 = vsel %vm291, %v417, -inf
          %v435 = vmax.f32 %v416, %v434
          %436 = vmax.xlane.f32.xlu0 %v435
          %v437 = vpop.xlane.xlu0 %436
          %v438 = vsel %vm291, %v419, -inf
          %v439 = vmax.f32 %v418, %v438
          %440 = vmax.xlane.f32.xlu0 %v439
          %v441 = vpop.xlane.xlu0 %440
          %v442 = vsel %vm291, %v421, -inf
          %v443 = vmax.f32 %v420, %v442
          %444 = vmax.xlane.f32.xlu0 %v443
          %v445 = vpop.xlane.xlu0 %444
          %v446 = vsel %vm291, %v423, -inf
          %v447 = vmax.f32 %v422, %v446
          %448 = vmax.xlane.f32.xlu0 %v447
          %v449 = vpop.xlane.xlu0 %448
          %v450 = vsel %vm291, %v425, -inf
          %v451 = vmax.f32 %v424, %v450
          %452 = vmax.xlane.f32.xlu0 %v451
          %v453 = vpop.xlane.xlu0 %452
          %v454 = vsel %vm291, %v427, -inf
          %v455 = vmax.f32 %v426, %v454
          %456 = vmax.xlane.f32.xlu0 %v455
          %v457 = vpop.xlane.xlu0 %456
          %v458 = vsel %vm291, %v429, -inf
          %v459 = vmax.f32 %v428, %v458
          %460 = vmax.xlane.f32.xlu0 %v459
          %v461 = vpop.xlane.xlu0 %460
          %v470 = vlaneseq
          %v471 = vand.u32 %v470, 127
          %v472 = vlaneseq
          %v473 = vshrl.u32 %v472, 7
          %v474 = vsub.s32 %v471, %v473
          %v475 = vrot.slane %v406, %v474
          %v476 = vadd.s32 %v471, 4294967288
          %v477 = vlaneseq
          %v478 = vshrl.u32 %v477, 7
          %v479 = vsub.s32 %v476, %v478
          %v480 = vrot.slane %v407, %v479
          %vm481 = vcmask 130112
          %v482 = vsel %vm481, %v480, %v475
          %v483 = vadd.s32 %v471, 4294967280
          %v484 = vlaneseq
          %v485 = vshrl.u32 %v484, 7
          %v486 = vsub.s32 %v483, %v485
          %v487 = vrot.slane %v408, %v486
          %vm488 = vcmask 195712
          %v489 = vsel %vm488, %v487, %v482
          %v490 = vadd.s32 %v471, 4294967272
          %v491 = vlaneseq
          %v492 = vshrl.u32 %v491, 7
          %v493 = vsub.s32 %v490, %v492
          %v494 = vrot.slane %v409, %v493
          %vm495 = vcmask 261312
          %v496 = vsel %vm495, %v494, %v489
          %v497 = vadd.s32 %v471, 4294967264
          %v498 = vlaneseq
          %v499 = vshrl.u32 %v498, 7
          %v500 = vsub.s32 %v497, %v499
          %v501 = vrot.slane %v410, %v500
          %vm502 = vcmask 326912
          %v503 = vsel %vm502, %v501, %v496
          %v504 = vadd.s32 %v471, 4294967256
          %v505 = vlaneseq
          %v506 = vshrl.u32 %v505, 7
          %v507 = vsub.s32 %v504, %v506
          %v508 = vrot.slane %v411, %v507
          %vm509 = vcmask 392512
          %v510 = vsel %vm509, %v508, %v503
          %v511 = vadd.s32 %v471, 4294967248
          %v512 = vlaneseq
          %v513 = vshrl.u32 %v512, 7
          %v514 = vsub.s32 %v511, %v513
          %v515 = vrot.slane %v412, %v514
          %vm516 = vcmask 458112
          %v517 = vsel %vm516, %v515, %v510
          %v518 = vadd.s32 %v471, 4294967240
          %v519 = vlaneseq
          %v520 = vshrl.u32 %v519, 7
          %v521 = vsub.s32 %v518, %v520
          %v522 = vrot.slane %v413, %v521
          %vm523 = vcmask 523712
          %v524 = vsel %vm523, %v522, %v517
          %v534 = vlaneseq
          %v535 = vshrl.u32 %v534, 7
          %v536 = vsub.s32 %v471, %v535
          %v537 = vrot.slane %v433, %v536
          %v538 = vlaneseq
          %v539 = vshrl.u32 %v538, 7
          %v540 = vsub.s32 %v476, %v539
          %v541 = vrot.slane %v437, %v540
          %v542 = vsel %vm481, %v541, %v537
          %v543 = vlaneseq
          %v544 = vshrl.u32 %v543, 7
          %v545 = vsub.s32 %v483, %v544
          %v546 = vrot.slane %v441, %v545
          %v547 = vsel %vm488, %v546, %v542
          %v548 = vlaneseq
          %v549 = vshrl.u32 %v548, 7
          %v550 = vsub.s32 %v490, %v549
          %v551 = vrot.slane %v445, %v550
          %v552 = vsel %vm495, %v551, %v547
          %v553 = vlaneseq
          %v554 = vshrl.u32 %v553, 7
          %v555 = vsub.s32 %v497, %v554
          %v556 = vrot.slane %v449, %v555
          %v557 = vsel %vm502, %v556, %v552
          %v558 = vlaneseq
          %v559 = vshrl.u32 %v558, 7
          %v560 = vsub.s32 %v504, %v559
          %v561 = vrot.slane %v453, %v560
          %v562 = vsel %vm509, %v561, %v557
          %v563 = vlaneseq
          %v564 = vshrl.u32 %v563, 7
          %v565 = vsub.s32 %v511, %v564
          %v566 = vrot.slane %v457, %v565
          %v567 = vsel %vm516, %v566, %v562
          %v568 = vlaneseq
          %v569 = vshrl.u32 %v568, 7
          %v570 = vsub.s32 %v518, %v569
          %v571 = vrot.slane %v461, %v570
          %v572 = vsel %vm523, %v571, %v567
          %vm574 = vcmask 1040384
          %v575 = vsel %vm574, %v524, %v572
          %v576 = vld [vmem:[%s1] sm:$0xf]
          %vm577 = vcmask 523264
          %v579 = vsel %vm577, %v575, 0
          %v582 = vsel %vm577, %v576, 0
          %584 = vmatprep.subr.mxu0 0.0
          %585 = vmatpush1.xpose.msra.mxu0 0.0
          %586 = vmatprep.subr.mxu0 0.0
          %587 = vmatpush1.xpose.msra.mxu0 0.0
          %588 = vmatprep.subr.mxu0 0.0
          %589 = vmatpush1.xpose.msra.mxu0 0.0
          %590 = vmatprep.subr.mxu0 0.0
          %591 = vmatpush1.xpose.msra.mxu0 0.0
          %592 = vmatprep.subr.mxu0 0.0
          %593 = vmatpush1.xpose.msra.mxu0 0.0
          %594 = vmatprep.subr.mxu0 0.0
          %595 = vmatpush1.xpose.msra.mxu0 0.0
          %596 = vmatprep.subr.mxu0 0.0
          %597 = vmatpush1.xpose.msra.mxu0 0.0
          %598 = vmatprep.subr.mxu0 0.0
          %599 = vmatpush1.xpose.msra.mxu0 0.0
          %600 = vmatprep.subr.mxu0 0.0
          %601 = vmatpush1.xpose.msra.mxu0 0.0
          %602 = vmatprep.subr.mxu0 0.0
          %603 = vmatpush1.xpose.msra.mxu0 0.0
          %604 = vmatprep.subr.mxu0 0.0
          %605 = vmatpush1.xpose.msra.mxu0 0.0
          %606 = vmatprep.subr.mxu0 0.0
          %607 = vmatpush1.xpose.msra.mxu0 0.0
          %608 = vmatprep.subr.mxu0 0.0
          %609 = vmatpush1.xpose.msra.mxu0 0.0
          %610 = vmatprep.subr.mxu0 0.0
          %611 = vmatpush1.xpose.msra.mxu0 0.0
          %612 = vmatprep.subr.mxu0 0.0
          %613 = vmatpush1.xpose.msra.mxu0 0.0
          %614 = vmatprep.subr.mxu0 0.0
          %615 = vmatpush1.xpose.msra.mxu0 %v582
          %616 = vmatprep.subr.mxu0 0.0
          %617 = vmatpush2.xpose.msra.mxu0 0.0
          %618 = vmatprep.subr.mxu0 0.0
          %619 = vmatpush2.xpose.msra.mxu0 0.0
          %620 = vmatprep.subr.mxu0 0.0
          %621 = vmatpush2.xpose.msra.mxu0 0.0
          %622 = vmatprep.subr.mxu0 0.0
          %623 = vmatpush2.xpose.msra.mxu0 0.0
          %624 = vmatprep.subr.mxu0 0.0
          %625 = vmatpush2.xpose.msra.mxu0 0.0
          %626 = vmatprep.subr.mxu0 0.0
          %627 = vmatpush2.xpose.msra.mxu0 0.0
          %628 = vmatprep.subr.mxu0 0.0
          %629 = vmatpush2.xpose.msra.mxu0 0.0
          %630 = vmatprep.subr.mxu0 0.0
          %631 = vmatpush2.xpose.msra.mxu0 0.0
          %632 = vmatprep.subr.mxu0 0.0
          %633 = vmatpush2.xpose.msra.mxu0 0.0
          %634 = vmatprep.subr.mxu0 0.0
          %635 = vmatpush2.xpose.msra.mxu0 0.0
          %636 = vmatprep.subr.mxu0 0.0
          %637 = vmatpush2.xpose.msra.mxu0 0.0
          %638 = vmatprep.subr.mxu0 0.0
          %639 = vmatpush2.xpose.msra.mxu0 0.0
          %640 = vmatprep.subr.mxu0 0.0
          %641 = vmatpush2.xpose.msra.mxu0 0.0
          %642 = vmatprep.subr.mxu0 0.0
          %643 = vmatpush2.xpose.msra.mxu0 0.0
          %644 = vmatprep.subr.mxu0 0.0
          %645 = vmatpush2.xpose.msra.mxu0 0.0
          %646 = vmatprep.subr.mxu0 0.0
          %647 = vmatpush2.xpose.msra.mxu0 0.0
          %648 = vmatprep.mubr.f32.mxu0 0.0
          %649 = vmatmul.mubr.f32.gmra.mxu0 %v579
          %v650 = vpop.f32.mrf.mxu0
          %v651 = vadd.f32 0.0, %v650
          %v652 = vpop.f32.mrf.mxu0
          %653 = vdwg.mxu0
          %v654 = vmax.f32 %v651, 0.0
          %v655 = vld [vmem:[%s2] sm:$0xff]
          %v656 = vld [vmem:[%s2 + $0x8] sm:$0xff]
          %v657 = vld [vmem:[%s2 + $0x10] sm:$0xff]
          %v658 = vld [vmem:[%s2 + $0x18] sm:$0xff]
          %v659 = vld [vmem:[%s2 + $0x20] sm:$0xff]
          %v660 = vld [vmem:[%s2 + $0x28] sm:$0xff]
          %v661 = vld [vmem:[%s2 + $0x30] sm:$0xff]
          %v662 = vld [vmem:[%s2 + $0x38] sm:$0xff]
          %vm663 = vcmask 31744
          %v665 = vsel %vm663, %v654, 0
          %v668 = vsel %vm663, %v655, 0
          %v671 = vsel %vm663, %v656, 0
          %v674 = vsel %vm663, %v657, 0
          %v677 = vsel %vm663, %v658, 0
          %v680 = vsel %vm663, %v659, 0
          %v683 = vsel %vm663, %v660, 0
          %v686 = vsel %vm663, %v661, 0
          %v689 = vsel %vm663, %v662, 0
          %691 = vmatprep.subr.mxu0 0.0
          %692 = vmatpush1.xpose.msra.mxu0 0.0
          %693 = vmatprep.subr.mxu0 0.0
          %694 = vmatpush1.xpose.msra.mxu0 0.0
          %695 = vmatprep.subr.mxu0 0.0
          %696 = vmatpush1.xpose.msra.mxu0 0.0
          %697 = vmatprep.subr.mxu0 0.0
          %698 = vmatpush1.xpose.msra.mxu0 0.0
          %699 = vmatprep.subr.mxu0 0.0
          %700 = vmatpush1.xpose.msra.mxu0 0.0
          %701 = vmatprep.subr.mxu0 0.0
          %702 = vmatpush1.xpose.msra.mxu0 0.0
          %703 = vmatprep.subr.mxu0 0.0
          %704 = vmatpush1.xpose.msra.mxu0 0.0
          %705 = vmatprep.subr.mxu0 0.0
          %706 = vmatpush1.xpose.msra.mxu0 0.0
          %707 = vmatprep.subr.mxu0 0.0
          %708 = vmatpush1.xpose.msra.mxu0 %v689
          %709 = vmatprep.subr.mxu0 0.0
          %710 = vmatpush1.xpose.msra.mxu0 %v686
          %711 = vmatprep.subr.mxu0 0.0
          %712 = vmatpush1.xpose.msra.mxu0 %v683
          %713 = vmatprep.subr.mxu0 0.0
          %714 = vmatpush1.xpose.msra.mxu0 %v680
          %715 = vmatprep.subr.mxu0 0.0
          %716 = vmatpush1.xpose.msra.mxu0 %v677
          %717 = vmatprep.subr.mxu0 0.0
          %718 = vmatpush1.xpose.msra.mxu0 %v674
          %719 = vmatprep.subr.mxu0 0.0
          %720 = vmatpush1.xpose.msra.mxu0 %v671
          %721 = vmatprep.subr.mxu0 0.0
          %722 = vmatpush1.xpose.msra.mxu0 %v668
          %723 = vmatprep.subr.mxu0 0.0
          %724 = vmatpush2.xpose.msra.mxu0 0.0
          %725 = vmatprep.subr.mxu0 0.0
          %726 = vmatpush2.xpose.msra.mxu0 0.0
          %727 = vmatprep.subr.mxu0 0.0
          %728 = vmatpush2.xpose.msra.mxu0 0.0
          %729 = vmatprep.subr.mxu0 0.0
          %730 = vmatpush2.xpose.msra.mxu0 0.0
          %731 = vmatprep.subr.mxu0 0.0
          %732 = vmatpush2.xpose.msra.mxu0 0.0
          %733 = vmatprep.subr.mxu0 0.0
          %734 = vmatpush2.xpose.msra.mxu0 0.0
          %735 = vmatprep.subr.mxu0 0.0
          %736 = vmatpush2.xpose.msra.mxu0 0.0
          %737 = vmatprep.subr.mxu0 0.0
          %738 = vmatpush2.xpose.msra.mxu0 0.0
          %739 = vmatprep.subr.mxu0 0.0
          %740 = vmatpush2.xpose.msra.mxu0 0.0
          %741 = vmatprep.subr.mxu0 0.0
          %742 = vmatpush2.xpose.msra.mxu0 0.0
          %743 = vmatprep.subr.mxu0 0.0
          %744 = vmatpush2.xpose.msra.mxu0 0.0
          %745 = vmatprep.subr.mxu0 0.0
          %746 = vmatpush2.xpose.msra.mxu0 0.0
          %747 = vmatprep.subr.mxu0 0.0
          %748 = vmatpush2.xpose.msra.mxu0 0.0
          %749 = vmatprep.subr.mxu0 0.0
          %750 = vmatpush2.xpose.msra.mxu0 0.0
          %751 = vmatprep.subr.mxu0 0.0
          %752 = vmatpush2.xpose.msra.mxu0 0.0
          %753 = vmatprep.subr.mxu0 0.0
          %754 = vmatpush2.xpose.msra.mxu0 0.0
          %755 = vmatprep.mubr.f32.mxu0 0.0
          %756 = vmatmul.mubr.f32.gmra.mxu0 %v665
          %v757 = vpop.f32.mrf.mxu0
          %v758 = vadd.f32 0.0, %v757
          %v759 = vpop.f32.mrf.mxu0
          %760 = vdwg.mxu0
          %v762 = vrot.slane %v758, 1
          %v764 = vadd.f32 %v758, %v762
          %v765 = vxor.u32 %v764, 2147483648
          %v766 = vmul.f32 %v765, 1.442695
          %v767 = vpow.pop %v766
          %v768 = vadd.f32 %v767, 1.0
          %v769 = vrcp.pop %v768
          %v770 = vmul.f32 1.0, %v769
          %vm771 = vcmask 516096
          %772 = vst.msk [vmem:[%s203] sm:$0x1] %vm771, %v770
        $region44: #{tpu_custom_call.1} parent=31 // pred_fallthru
          _
        %s773 = sand.u32 %s110, 1
        %s774 = scalar_lea.sflag [#allocation6], %s773
        %s775 = sand.u32 %s110, 1
        %s776 = scalar_lea.vmem [#allocation7], %s775
        // Predicated region
        $region45: #{tpu_custom_call.1} parent=31 // pred_check
          %p777 = pneg %p120
        $region46: #{tpu_custom_call.1} parent=31 // pred_check_branch
          %779 = sbr.rel (%p777) target = $region48
        $region47: #{tpu_custom_call.1} parent=31 // pred_region
          %s781 = ssub.s32 16, 16
          %782 = vsyncadd %s774, %s781
          %s783 = smul.addr %s24, 16
          %s784 = scalar_lea.hbm %s3, %s783
          %s786 = sshll.u32 %s776, 4
          %s787 = int_to_ptr.vmem [resolvable:$true] %s786
          %789 = dma.vmem_to_hbm [thread:$0]  %s787, 16, %s784, %s774
        $region48: #{tpu_custom_call.1} parent=31 // pred_fallthru
          _
      $region32: #{tpu_custom_call.1} parent=5 // pred_fallthru
        _
      %p790 = scmp.le.s32.totalorder 2, %s15
      // Predicated region
      $region49: #{tpu_custom_call.1} parent=5 // pred_check
        %p791 = pneg %p790
      $region50: #{tpu_custom_call.1} parent=5 // pred_check_branch
        %793 = sbr.rel (%p791) target = $region52
      $region51: #{tpu_custom_call.1} parent=5 // pred_region
        %s794 = ssub.s32 %s15, 2
        // Predicated region
        $region53: #{tpu_custom_call.1} parent=51 // pred_check
          %p795 = pneg %p126
        $region54: #{tpu_custom_call.1} parent=51 // pred_check_branch
          %797 = sbr.rel (%p795) target = $region56
        $region55: #{tpu_custom_call.1} parent=51 // pred_region
          %s798 = sand.u32 %s111, 1
          %s799 = scalar_lea.sflag [#allocation6], %s798
          %s800 = sand.u32 %s111, 1
          %s801 = scalar_lea.vmem [#allocation7], %s800
          %802 = dma.done %s799, 16
        $region56: #{tpu_custom_call.1} parent=51 // pred_fallthru
          _
      $region52: #{tpu_custom_call.1} parent=5 // pred_fallthru
        _
    $region6: #{tpu_custom_call.1} parent=1 // loop_footer
      %s19 = sadd.s32 1, %s15
    $region7: #{tpu_custom_call.1} parent=1 // loop_footer_branch
      %14 = sbr.rel target = $region3
    $region8: #{tpu_custom_call.1} parent=1 // loop_exit
      _
    %803 = vsyncpa [#allocation5], 1
    %s804 = scalar_lea.sflag [#allocation5], 1
    %805 = vsyncpa %s804, 1
    %806 = vsyncpa [#allocation6], 1
    %s807 = scalar_lea.sflag [#allocation6], 1
    %808 = vsyncpa %s807, 1

</llo_original>
